<compile_context>
chip_gen: v7x
topology: tpu7x:2x2x1
jax: 0.10.0
libtpu: 0.0.40
codegen_flags: <defaults>
</compile_context>

<pallas_src>
import functools

import numpy as np

import jax
import jax.numpy as jnp
from jax.experimental import pallas as pl
from jax.experimental.pallas import tpu as pltpu


def _round_up(x: int, m: int) -> int:
    return (x + m - 1) // m * m


def _vmem_capacity_bytes() -> int:
    """Per-TensorCore VMEM capacity; conservative fallback if query fails."""
    try:
        return int(pltpu.get_tpu_info().vmem_capacity_bytes)
    except Exception:
        return 64 << 20   # v7x per-core VMEM (smallest of v5e/v6e/v7x)


def _gcn_fused_kernel(x_hbm, a_in, w_ref, b_ref, o_ref, *scratch,
                      num_relu: int, tm: int, a_resident: bool):
    """Fused multi-layer GraphConv.

    grid = (layer l, row tile r).  Refs:
      x_hbm : (N_pad, F)      padded input features, raw HBM (ANY) -> DMA once
      a_in  : resident: (N_pad, N_pad) raw HBM (ANY)  (DMA'd once into a_buf)
              streaming: (tm, N_pad) pipelined row tile of normalized adjacency
      w_ref : (F, F)          layer-l weight (bf16), zero padded
      b_ref : (1, F)          layer-l bias (f32), zero padded
      o_ref : (tm, F)         output row tile (f32), flushed only after last layer
      scratch: h_buf (N_pad,F), hw_buf (N_pad,F), [a_buf (N_pad,N_pad)], sem
    """
    if a_resident:
        h_buf, hw_buf, a_buf, sem = scratch
    else:
        h_buf, hw_buf, sem = scratch
        a_buf = None

    l = pl.program_id(0)
    r = pl.program_id(1)
    last_layer = pl.num_programs(0) - 1

    # Seed (first grid step only): DMA node features into the resident H
    # buffer, and in resident-A mode the whole adjacency into its single VMEM
    # copy. Both DMAs are started before either is waited on.
    @pl.when((l == 0) & (r == 0))
    def _seed():
        cx = pltpu.make_async_copy(x_hbm, h_buf, sem.at[0])
        cx.start()
        if a_resident:
            ca = pltpu.make_async_copy(a_in, a_buf, sem.at[1])
            ca.start()
            ca.wait()
        cx.wait()

    # Stage 1 — once per layer: HW = H_{l-1} @ W_l (bf16 in, f32 accumulate).
    # After this point H_{l-1} is dead, so h_buf is overwritten in place by
    # this layer's output rows (no ping-pong buffer required).
    @pl.when(r == 0)
    def _stage1():
        hw_buf[...] = jnp.dot(
            h_buf[...], w_ref[...],
            preferred_element_type=jnp.float32).astype(hw_buf.dtype)

    # Stage 2 — every row tile: rows = A[tile, :] @ HW + b (+ ReLU on hidden
    # layers).
    row0 = pl.multiple_of(r * tm, tm)
    if a_resident:
        a_tile = a_buf[pl.ds(row0, tm), :]
    else:
        a_tile = a_in[...]
    agg = jnp.dot(a_tile, hw_buf[...], preferred_element_type=jnp.float32)
    out = agg + b_ref[...]                      # (1, F) bias broadcasts over rows
    out = jnp.where(l < num_relu, jnp.maximum(out, 0.0), out)

    h_buf[pl.ds(row0, tm), :] = out.astype(h_buf.dtype)   # becomes H_l

    # Only the final layer's rows ever reach HBM: the out_spec index map keeps
    # the output block index constant for l < last, so no intermediate
    # writeback is issued by the pipeliner.
    @pl.when(l == last_layer)
    def _emit():
        o_ref[...] = out.astype(o_ref.dtype)


def gcn_forward(a_norm, features, params, latent=None, *,
                compute_dtype=jnp.bfloat16,
                _force_stream=False, _max_tm=None):
    """Full GCN forward as a single fused Pallas kernel.

    params: list of (W, b) per GraphConv layer. ReLU on all but the last layer.
    latent=i returns the output of layer i (post-activation), as in the module.
    `_force_stream` / `_max_tm` are test hooks to exercise the streamed-A path.
    """
    num_layers_total = len(params)
    if latent is not None:
        if latent < 0 or latent > num_layers_total:
            raise ValueError("Invald interal layer requested")
    # latent == len(params) matches the original module: loop never early-returns.
    if latent is not None and latent < num_layers_total:
        layers_run = latent + 1
    else:
        layers_run = num_layers_total
    params_run = params[:layers_run]
    # Layers 0..L-2 of the ORIGINAL stack carry ReLU; the last GraphConv does not.
    num_relu = min(layers_run, num_layers_total - 1)

    n = a_norm.shape[0]
    f_in0 = features.shape[1]
    f_dims = [f_in0] + [w.shape[0] for (w, _) in params_run] \
                     + [w.shape[1] for (w, _) in params_run]
    f_max = _round_up(max(f_dims), 128)
    cb = jnp.dtype(compute_dtype).itemsize

    vmem_cap = _vmem_capacity_bytes()
    usable = int(vmem_cap * 0.80)      # headroom for Mosaic-internal scratch

    def _pipeline_fixed(tm_out):
        # VMEM independent of the A strategy: W_l double-buffered, bias
        # double-buffered (sublane padded), f32 output tile double-buffered.
        return (2 * f_max * f_max * cb
                + 2 * 8 * f_max * 4
                + 2 * tm_out * f_max * 4)

    # --- Choose A strategy + row tile from the per-generation VMEM budget. ---
    n_pad8 = _round_up(n, 8)
    resident_need = (_pipeline_fixed(n_pad8)
                     + 2 * n_pad8 * f_max * cb      # H + HW scratch
                     + n_pad8 * f_max * 4           # stage-1 f32 intermediate
                     + n_pad8 * n_pad8 * cb)        # single resident A copy
    a_resident = (not _force_stream) and (resident_need <= usable)

    if a_resident:
        n_pad, tm, n_tiles, vmem_need = n_pad8, n_pad8, 1, resident_need
    else:
        chosen = None
        for tm_c in (256, 128, 64, 32, 16, 8):
            if _max_tm is not None and tm_c > _max_tm:
                continue
            n_pad_c = _round_up(n, tm_c)
            need = (_pipeline_fixed(tm_c)
                    + 2 * n_pad_c * f_max * cb      # H + HW scratch
                    + n_pad_c * f_max * 4           # stage-1 f32 intermediate
                    + 2 * tm_c * n_pad_c * cb)      # streamed A tiles (x2 buffers)
            if need <= usable:
                chosen = (tm_c, n_pad_c, need)
                break
        if chosen is None:
            # TODO(synk): no HBM-spilled-H fallback for graphs whose resident
            # H/HW state itself exceeds VMEM; fail loudly rather than silently
            # overflowing the scoped VMEM limit.
            raise ValueError(
                f"GCN graph too large for fused VMEM-resident kernel: n={n}, "
                f"f_max={f_max}, usable VMEM={usable} bytes.")
        tm, n_pad, vmem_need = chosen
        n_tiles = n_pad // tm

    # Zero-pad everything: padded rows/cols stay exactly zero through the whole
    # stack (zero adjacency rows/cols, zero weight rows/cols, zero bias pad),
    # so slicing at the end is exact.
    a_p = jnp.pad(a_norm, ((0, n_pad - n), (0, n_pad - n))).astype(compute_dtype)
    x_p = jnp.pad(features, ((0, n_pad - n), (0, f_max - f_in0))).astype(compute_dtype)
    w_stack = jnp.stack([
        jnp.pad(w, ((0, f_max - w.shape[0]), (0, f_max - w.shape[1])))
        for (w, _) in params_run]).astype(compute_dtype)
    b_stack = jnp.stack([
        jnp.pad(b, (0, f_max - b.shape[0])) for (_, b) in params_run
    ]).astype(jnp.float32).reshape(layers_run, 1, f_max)

    if a_resident:
        a_spec = pl.BlockSpec(memory_space=pl.ANY)          # DMA'd once in-kernel
    else:
        a_spec = pl.BlockSpec((tm, n_pad), lambda l, r: (r, 0))

    # Output index map: keep the block index pinned at (0, 0) until the final
    # layer so the pipeliner writes each output row tile back to HBM exactly
    # once, carrying final-layer data.
    if n_tiles == 1:
        out_index = lambda l, r: (0, 0)
    elif layers_run == 1:
        out_index = lambda l, r: (r, 0)
    else:
        last_l = layers_run - 1
        out_index = lambda l, r: ((l // last_l) * r, 0)   # 0 until l == last_l

    scratch = [pltpu.VMEM((n_pad, f_max), compute_dtype),   # H    (resident)
               pltpu.VMEM((n_pad, f_max), compute_dtype)]   # H@W  (resident)
    if a_resident:
        scratch.append(pltpu.VMEM((n_pad, n_pad), compute_dtype))  # A, single copy
    scratch.append(pltpu.SemaphoreType.DMA((2,)))

    # Clamp the scoped-VMEM request to the actual per-core capacity (v7x: 64MiB).
    vmem_limit = min(int(vmem_cap * 0.90),
                     max(vmem_need + (8 << 20), 32 << 20))

    flops = layers_run * (2 * n_pad * f_max * f_max + 2 * n_pad * n_pad * f_max)
    a_reads = 1 if a_resident else layers_run
    bytes_accessed = int(
        a_reads * n_pad * n_pad * cb
        + n_pad * f_max * cb
        + layers_run * (f_max * f_max * cb + 8 * f_max * 4)
        + n_pad * f_max * 4)                                 # output written once

    kernel = functools.partial(_gcn_fused_kernel, num_relu=num_relu, tm=tm,
                               a_resident=a_resident)

    out_pad = pl.pallas_call(
        kernel,
        out_shape=jax.ShapeDtypeStruct((n_pad, f_max), jnp.float32),
        grid_spec=pltpu.PrefetchScalarGridSpec(
            num_scalar_prefetch=0,
            grid=(layers_run, n_tiles),
            in_specs=[
                pl.BlockSpec(memory_space=pl.ANY),                           # X (HBM)
                a_spec,                                                      # A
                pl.BlockSpec((None, f_max, f_max), lambda l, r: (l, 0, 0)),  # W_l
                pl.BlockSpec((None, 1, f_max), lambda l, r: (l, 0, 0)),      # b_l
            ],
            out_specs=pl.BlockSpec((tm, f_max), out_index),
            scratch_shapes=scratch,
        ),
        compiler_params=pltpu.CompilerParams(
            # Scratch-carried state across BOTH axes -> must stay sequential.
            dimension_semantics=("arbitrary", "arbitrary"),
            vmem_limit_bytes=vmem_limit,
        ),
        cost_estimate=pl.CostEstimate(
            flops=flops, transcendentals=0, bytes_accessed=bytes_accessed),
    )(x_p, a_p, w_stack, b_stack)

    f_out_last = params_run[-1][0].shape[1]
    return out_pad[:n, :f_out_last]


def gcn_reference(a_norm, features, params):
    """Pure-JAX f32 reference matching the PyTorch module (eval mode)."""
    h = features
    n_layers = len(params)
    for i, (w, b) in enumerate(params):
        h = a_norm @ (h @ w) + b
        if i < n_layers - 1:
            h = jax.nn.relu(h)
    return h


def make_gcn_params(key, num_features, n_hidden, n_layers, num_classes):
    """Deterministic Xavier-uniform-like init mirroring GraphConv param shapes."""
    dims = [num_features] + [n_hidden] * n_layers + [num_classes]
    params = []
    for i in range(len(dims) - 1):
        key, wk = jax.random.split(key)
        f_in, f_out = dims[i], dims[i + 1]
        limit = jnp.sqrt(6.0 / (f_in + f_out))
        w = jax.random.uniform(wk, (f_in, f_out), jnp.float32, -limit, limit)
        b = jnp.zeros((f_out,), jnp.float32)
        params.append((w, b))
    return params


def make_normalized_adjacency(key, n):
    """Random undirected graph with self-loops, symmetric normalization."""
    a = (jax.random.uniform(key, (n, n)) > 0.6).astype(jnp.float32)
    a = jnp.maximum(a, a.T)                      # undirected
    a = a * (1.0 - jnp.eye(n)) + jnp.eye(n)      # add self-loops
    deg = jnp.sum(a, axis=1)
    d_inv_sqrt = 1.0 / jnp.sqrt(deg)
    return a * d_inv_sqrt[:, None] * d_inv_sqrt[None, :]


if __name__ == "__main__":
    key = jax.random.PRNGKey(0)
    kg, kf, kp, kg2, kf2 = jax.random.split(key, 5)

    # Small shapes consistent with the module's constructor.
    num_nodes = 8
    num_features = 32
    n_hidden = 32
    n_layers = 2          # -> 3 GraphConv layers total (as in GCN.__init__)
    num_classes = 4

    a_norm = make_normalized_adjacency(kg, num_nodes)
    features = jax.random.normal(kf, (num_nodes, num_features), jnp.float32)
    params = make_gcn_params(kp, num_features, n_hidden, n_layers, num_classes)

    # Resident-A path (small graph -> whole A lives in VMEM, DMA'd once).
    out = gcn_forward(a_norm, features, params)
    out = jax.block_until_ready(out)
    assert out.shape == (num_nodes, num_classes)

    # Loose tolerance: kernel matmuls are bf16-in / f32-accumulate.
    ref = gcn_reference(a_norm, features, params)
    np.testing.assert_allclose(np.asarray(out), np.asarray(ref), atol=0.1, rtol=0.1)

    # Latent (internal layer) path also runs through the fused kernel.
    h1 = gcn_forward(a_norm, features, params, latent=1)
    h1 = jax.block_until_ready(h1)
    assert h1.shape == (num_nodes, n_hidden)

    # Streaming-A path (forced) at a small size: tiled A rows, multi-tile grid,
    # final-layer-only output writeback.
    n2 = 200
    a2 = make_normalized_adjacency(kg2, n2)
    x2 = jax.random.normal(kf2, (n2, num_features), jnp.float32)
    out2 = gcn_forward(a2, x2, params, _force_stream=True, _max_tm=128)
    out2 = jax.block_until_ready(out2)
    assert out2.shape == (n2, num_classes)
    ref2 = gcn_reference(a2, x2, params)
    np.testing.assert_allclose(np.asarray(out2), np.asarray(ref2), atol=0.1, rtol=0.1)

    print("KERNEL_OK")
</pallas_src>

<mosaic_0001>
module attributes {stable_mosaic.version = 11 : i64} {
  func.func @_gcn_fused_kernel(%arg0: i32, %arg1: i32, %arg2: memref<8x128xbf16, #tpu.memory_space<any>>, %arg3: memref<8x8xbf16, #tpu.memory_space<any>>, %arg4: memref<1x128x128xbf16, #tpu.memory_space<vmem>>, %arg5: memref<1x1x128xf32, #tpu.memory_space<vmem>>, %arg6: memref<8x128xf32, #tpu.memory_space<vmem>>, %arg7: memref<8x128xbf16, #tpu.memory_space<vmem>>, %arg8: memref<8x128xbf16, #tpu.memory_space<vmem>>, %arg9: memref<8x8xbf16, #tpu.memory_space<vmem>>, %arg10: memref<2x!tpu.dma_semaphore, #tpu.memory_space<semaphore_mem>>) attributes {dimension_semantics = [#tpu.dimension_semantics<arbitrary>, #tpu.dimension_semantics<arbitrary>], iteration_bounds = array<i64: 3, 1>, scalar_prefetch = 0 : i64, scratch_operands = 4 : i64, tpu.core_type = #tpu.core_type<tc>, window_params = [{}, {}, {transform_indices = @transform_2, window_bounds = array<i64: 1, 128, 128>}, {transform_indices = @transform_3, window_bounds = array<i64: 1, 1, 128>}, {pipeline_mode = #tpu.pipeline_mode<synchronous>, transform_indices = @transform_4, window_bounds = array<i64: 8, 128>}]} {
    %c0_i32 = arith.constant 0 : i32
    %0 = arith.cmpi eq, %arg0, %c0_i32 : i32
    %c0_i32_0 = arith.constant 0 : i32
    %1 = arith.cmpi eq, %arg1, %c0_i32_0 : i32
    %2 = arith.andi %0, %1 : i1
    %3 = arith.extui %2 : i1 to i32
    %c0_i32_1 = arith.constant 0 : i32
    %4 = arith.cmpi ne, %3, %c0_i32_1 : i32
    scf.if %4 {
      %c0_i32_13 = arith.constant 0 : i32
      %28 = tpu.memref_slice %arg10[%c0_i32_13] : memref<2x!tpu.dma_semaphore, #tpu.memory_space<semaphore_mem>> -> memref<1x!tpu.dma_semaphore, #tpu.memory_space<semaphore_mem>>
      %29 = tpu.memref_squeeze %28 : memref<1x!tpu.dma_semaphore, #tpu.memory_space<semaphore_mem>> -> memref<!tpu.dma_semaphore, #tpu.memory_space<semaphore_mem>>
      tpu.enqueue_dma source(%arg2 : memref<8x128xbf16, #tpu.memory_space<any>>) target(%arg7 : memref<8x128xbf16, #tpu.memory_space<vmem>>) target_semaphore(%29 : memref<!tpu.dma_semaphore, #tpu.memory_space<semaphore_mem>>)
      %c1_i32 = arith.constant 1 : i32
      %30 = tpu.memref_slice %arg10[%c1_i32] : memref<2x!tpu.dma_semaphore, #tpu.memory_space<semaphore_mem>> -> memref<1x!tpu.dma_semaphore, #tpu.memory_space<semaphore_mem>>
      %31 = tpu.memref_squeeze %30 : memref<1x!tpu.dma_semaphore, #tpu.memory_space<semaphore_mem>> -> memref<!tpu.dma_semaphore, #tpu.memory_space<semaphore_mem>>
      tpu.enqueue_dma source(%arg3 : memref<8x8xbf16, #tpu.memory_space<any>>) target(%arg9 : memref<8x8xbf16, #tpu.memory_space<vmem>>) target_semaphore(%31 : memref<!tpu.dma_semaphore, #tpu.memory_space<semaphore_mem>>)
      %c1_i32_14 = arith.constant 1 : i32
      %32 = tpu.memref_slice %arg10[%c1_i32_14] : memref<2x!tpu.dma_semaphore, #tpu.memory_space<semaphore_mem>> -> memref<1x!tpu.dma_semaphore, #tpu.memory_space<semaphore_mem>>
      %33 = tpu.memref_squeeze %32 : memref<1x!tpu.dma_semaphore, #tpu.memory_space<semaphore_mem>> -> memref<!tpu.dma_semaphore, #tpu.memory_space<semaphore_mem>>
      tpu.wait_dma2 semaphore(%33 : memref<!tpu.dma_semaphore, #tpu.memory_space<semaphore_mem>>) src(%arg3 : memref<8x8xbf16, #tpu.memory_space<any>>) dst(%arg9 : memref<8x8xbf16, #tpu.memory_space<vmem>>)
      %c0_i32_15 = arith.constant 0 : i32
      %34 = tpu.memref_slice %arg10[%c0_i32_15] : memref<2x!tpu.dma_semaphore, #tpu.memory_space<semaphore_mem>> -> memref<1x!tpu.dma_semaphore, #tpu.memory_space<semaphore_mem>>
      %35 = tpu.memref_squeeze %34 : memref<1x!tpu.dma_semaphore, #tpu.memory_space<semaphore_mem>> -> memref<!tpu.dma_semaphore, #tpu.memory_space<semaphore_mem>>
      tpu.wait_dma2 semaphore(%35 : memref<!tpu.dma_semaphore, #tpu.memory_space<semaphore_mem>>) src(%arg2 : memref<8x128xbf16, #tpu.memory_space<any>>) dst(%arg7 : memref<8x128xbf16, #tpu.memory_space<vmem>>)
    } else {
    }
    %c0_i32_2 = arith.constant 0 : i32
    %5 = arith.cmpi eq, %arg1, %c0_i32_2 : i32
    %6 = arith.extui %5 : i1 to i32
    %c0_i32_3 = arith.constant 0 : i32
    %7 = arith.cmpi ne, %6, %c0_i32_3 : i32
    scf.if %7 {
      %c0_13 = arith.constant 0 : index
      %c0_14 = arith.constant 0 : index
      %28 = vector.load %arg7[%c0_13, %c0_14] : memref<8x128xbf16, #tpu.memory_space<vmem>>, vector<8x128xbf16>
      %c0_15 = arith.constant 0 : index
      %c0_16 = arith.constant 0 : index
      %c0_17 = arith.constant 0 : index
      %29 = vector.load %arg4[%c0_15, %c0_16, %c0_17] : memref<1x128x128xbf16, #tpu.memory_space<vmem>>, vector<1x128x128xbf16>
      %30 = vector.shape_cast %29 : vector<1x128x128xbf16> to vector<128x128xbf16>
      %cst_18 = arith.constant dense<0.000000e+00> : vector<8x128xf32>
      %31 = tpu.matmul %28, %30, %cst_18 {dimension_numbers = #tpu.dot_dimension_numbers<[1], [0], [0], [1], [0, 0, 1, 1], [], []>} : vector<8x128xbf16>, vector<128x128xbf16>, vector<8x128xf32> -> vector<8x128xf32>
      %32 = arith.truncf %31 : vector<8x128xf32> to vector<8x128xbf16>
      %c0_19 = arith.constant 0 : index
      %c0_20 = arith.constant 0 : index
      %33 = vector.load %arg8[%c0_19, %c0_20] : memref<8x128xbf16, #tpu.memory_space<vmem>>, vector<8x128xbf16>
      tpu.vector_store %arg8[%c0_19, %c0_20], %32 {strides = array<i32>} : memref<8x128xbf16, #tpu.memory_space<vmem>>, vector<8x128xbf16>,
    } else {
    }
    %c8_i32 = arith.constant 8 : i32
    %8 = arith.muli %arg1, %c8_i32 : i32
    %9 = tpu.assume_multiple %8, 8 : i32
    %10 = arith.index_cast %9 : i32 to index
    %c0 = arith.constant 0 : index
    %11 = vector.load %arg9[%10, %c0] : memref<8x8xbf16, #tpu.memory_space<vmem>>, vector<8x8xbf16>
    %c0_4 = arith.constant 0 : index
    %c0_5 = arith.constant 0 : index
    %12 = vector.load %arg8[%c0_4, %c0_5] : memref<8x128xbf16, #tpu.memory_space<vmem>>, vector<8x128xbf16>
    %cst = arith.constant dense<0.000000e+00> : vector<8x128xf32>
    %13 = tpu.matmul %11, %12, %cst {dimension_numbers = #tpu.dot_dimension_numbers<[1], [0], [0], [1], [0, 0, 1, 1], [], []>} : vector<8x8xbf16>, vector<8x128xbf16>, vector<8x128xf32> -> vector<8x128xf32>
    %c0_6 = arith.constant 0 : index
    %c0_7 = arith.constant 0 : index
    %c0_8 = arith.constant 0 : index
    %14 = vector.load %arg5[%c0_6, %c0_7, %c0_8] : memref<1x1x128xf32, #tpu.memory_space<vmem>>, vector<1x1x128xf32>
    %15 = vector.shape_cast %14 : vector<1x1x128xf32> to vector<1x128xf32>
    %16 = vector.broadcast %15 : vector<1x128xf32> to vector<8x128xf32>
    %17 = arith.addf %13, %16 : vector<8x128xf32>
    %c2_i32 = arith.constant 2 : i32
    %18 = arith.cmpi slt, %arg0, %c2_i32 : i32
    %cst_9 = arith.constant 0.000000e+00 : f32
    %19 = vector.broadcast %cst_9 : f32 to vector<8x128xf32>
    %20 = arith.maximumf %17, %19 : vector<8x128xf32>
    %21 = arith.select %18, %20, %17 : vector<8x128xf32>
    %22 = arith.truncf %21 : vector<8x128xf32> to vector<8x128xbf16>
    %23 = arith.index_cast %9 : i32 to index
    %c0_10 = arith.constant 0 : index
    %24 = vector.load %arg7[%23, %c0_10] : memref<8x128xbf16, #tpu.memory_space<vmem>>, vector<8x128xbf16>
    tpu.vector_store %arg7[%23, %c0_10], %22 {strides = array<i32>} : memref<8x128xbf16, #tpu.memory_space<vmem>>, vector<8x128xbf16>,
    %c2_i32_11 = arith.constant 2 : i32
    %25 = arith.cmpi eq, %arg0, %c2_i32_11 : i32
    %26 = arith.extui %25 : i1 to i32
    %c0_i32_12 = arith.constant 0 : i32
    %27 = arith.cmpi ne, %26, %c0_i32_12 : i32
    scf.if %27 {
      %c0_13 = arith.constant 0 : index
      %c0_14 = arith.constant 0 : index
      %28 = vector.load %arg6[%c0_13, %c0_14] : memref<8x128xf32, #tpu.memory_space<vmem>>, vector<8x128xf32>
      tpu.vector_store %arg6[%c0_13, %c0_14], %21 {strides = array<i32>} : memref<8x128xf32, #tpu.memory_space<vmem>>, vector<8x128xf32>,
    } else {
    }
    return
  }
  func.func @transform_2(%arg0: i32, %arg1: i32) -> (i32, i32, i32) {
    %c0_i32 = arith.constant 0 : i32
    %c0_i32_0 = arith.constant 0 : i32
    %c0_i32_1 = arith.constant 0 : i32
    return %arg0, %c0_i32, %c0_i32_0 : i32, i32, i32
  }
  func.func @transform_3(%arg0: i32, %arg1: i32) -> (i32, i32, i32) {
    %c0_i32 = arith.constant 0 : i32
    %c0_i32_0 = arith.constant 0 : i32
    %c0_i32_1 = arith.constant 0 : i32
    return %arg0, %c0_i32, %c0_i32_0 : i32, i32, i32
  }
  func.func @transform_4(%arg0: i32, %arg1: i32) -> (i32, i32) {
    %c0_i32 = arith.constant 0 : i32
    %c0_i32_0 = arith.constant 0 : i32
    %c0_i32_1 = arith.constant 0 : i32
    return %c0_i32, %c0_i32_0 : i32, i32
  }
}

</mosaic_0001>

<llo_original>
// kernel: tpu_custom_call.1
$region0: #{tpu_custom_call.1}
  #allocation0 [shape = 'u32[]', space=smem, size = 0x4, offset = 0x4, fixed_abs, tag = 'smem constant byte address 0x4 - core index']
  #allocation1 [shape = 'u32[144,128]{1,0:T(1,128)}', space=vmem, size = 0x12000, scoped, tag = 'internal scratch']
  #allocation2 [shape = 'bf16[8,128]{1,0:T(8,128)(2,1)}', space=vmem, size = 0x800, scoped, tag = 'scratch operand']
  #allocation3 [shape = 'bf16[8,128]{1,0:T(8,128)(2,1)}', space=vmem, size = 0x800, scoped, tag = 'scratch operand']
  #allocation4 [shape = 'bf16[8,8]{1,0:T(8,128)(2,1)}', space=vmem, size = 0x800, scoped, tag = 'scratch operand']
  #allocation5 [shape = 's32[2]{0}', space=sflag, size = 0x8, scoped, tag = 'scratch operand']
  #allocation10 [shape = 's32[]', space=sflag, size = 0x4, offset = 0, fixed_abs, tag = 'sflag constant byte address 0x0 - dummy sync flag']
  #allocation11 [shape = 's32[]', space=sflag, size = 0x4, offset = 0, fixed_abs, tag = 'sflag constant byte address 0x0 - dummy sync flag']
  #allocation12 [shape = 'u32[]', space=smem, size = 0x4, offset = 0x44, fixed_abs, tag = 'smem constant byte address 0x44 - assertion arg 0']
  #allocation13 [shape = 'u32[]', space=smem, size = 0x4, offset = 0x48, fixed_abs, tag = 'smem constant byte address 0x48 - assertion arg 1']
  #allocation14 [shape = 's32[]', space=sflag, size = 0x4, offset = 0, fixed_abs, tag = 'sflag constant byte address 0x0 - dummy sync flag']
  #allocation15 [shape = 's32[]', space=sflag, size = 0x4, offset = 0, fixed_abs, tag = 'sflag constant byte address 0x0 - dummy sync flag']
  %s0 = inlined_call_operand.hbm [shape: bf16[8,128], index: 0, kind: input, shape index: {}]
  %s1 = inlined_call_operand.hbm [shape: bf16[8,8], index: 1, kind: input, shape index: {}]
  %s2 = inlined_call_operand.hbm [shape: bf16[3,128,128], index: 2, kind: input, shape index: {}]
  %s3 = inlined_call_operand.vmem [shape: f32[3,1,128], index: 3, kind: input, shape index: {}]
  %s4 = inlined_call_operand.hbm [shape: f32[8,128], index: 4, kind: output, shape index: {}]
  %s5 = sld [smem:[#allocation0]]
  $region65: #{tpu_custom_call.1} parent=0
    _
  %s7 = ssub.s32 1, %s5
  %s8 = scalar_select 0, %s7, %s5
  $region1: #{tpu_custom_call.1} parent=0
    #allocation6 [shape = 'u8[65536]{0}', space=vmem, size = 0x10000, scoped, tag = 'input window, operand 2']
    #allocation7 [shape = 's32[2]{0}', space=sflag, size = 0x8, scoped, tag = 'scoped memory for tpu_custom_call.1']
    #allocation8 [shape = 's32[2]{0}', space=sflag, size = 0x8, scoped, tag = 'scoped memory for tpu_custom_call.1']
    #allocation9 [shape = 'u8[4096]{0}', space=vmem, size = 0x1000, scoped, tag = 'output window, operand 0, single buffered']
    %9 = vsyncpa [#allocation7], 0
    %s10 = scalar_lea.sflag [#allocation7], 1
    %11 = vsyncpa %s10, 0
    %12 = vsyncpa [#allocation8], 0
    loop: start=0, step=1, limit=5
    $region2: #{tpu_custom_call.1} parent=1 // loop_pre_header
      _
    $region3: #{tpu_custom_call.1} parent=1 // loop_header
      %s14 = sphi 0, %s18
      %p15 = scmp.ge.s32.totalorder %s14, 5
      %s21 = sphi 0, %s33
      %s22 = sphi 0, %s29
      %s23 = sphi 0, %s21
      %s24 = sphi 0, %s22
      %s25 = sphi 0, %s23
      %s26 = sphi 0, %s24
      %s36 = sphi 0, %s38
      %s39 = sphi 0, %s36
      %s40 = sphi 0, %s39
      %s56 = sphi 0, %s40
      %s62 = sphi 0, %s64
      %s65 = sphi 0, %s62
      %s66 = sphi 0, %s65
      %s82 = sphi 0, %s66
      %s86 = sphi 0, %s86
      %s88 = sphi 0, %s86
      %s89 = sphi 0, %s88
      %s103 = sphi 0, %s89
    $region4: #{tpu_custom_call.1} parent=1 // loop_header_branch
      %17 = sbr.rel (%p15) target = $region8
    $region5: #{tpu_custom_call.1} parent=1 // loop_body
      %s19 = ssub.s32 %s14, 1
      %s20 = ssub.s32 %s14, 2
      %s27 = sadd.s32 1, %s22
      %p28 = scmp.ge.s32.totalorder %s27, 1
      %s29 = scalar_select %p28, 0, %s27
      %s30 = sadd.s32 1, %s21
      %s31 = scalar_select %p28, %s30, %s21
      %p32 = scmp.ge.s32.totalorder %s31, 3
      %s33 = scalar_select %p32, 0, %s31
      %s34 = ssub.s32 %s21, %s33
      %p35 = scmp.eq.s32.totalorder %s34, 0
      %s37 = sadd.s32 %s36, 1
      %s38 = scalar_select %p35, %s36, %s37
      %p41 = pneg %p35
      %p42 = scmp.eq.s32.totalorder %s14, 2
      %p43 = por %p41, %p42
      %p44 = scmp.ne.s32.totalorder %s36, %s39
      %p45 = scmp.eq.s32.totalorder %s14, 0
      %p46 = por %p44, %p45
      %p47 = scmp.ne.s32.totalorder %s36, %s39
      %p48 = scmp.eq.s32.totalorder %s19, 2
      %p49 = por %p47, %p48
      %p50 = scmp.ne.s32.totalorder %s39, %s40
      %p51 = scmp.eq.s32.totalorder %s19, 0
      %p52 = por %p50, %p51
      %p53 = scmp.ne.s32.totalorder %s39, %s40
      %p54 = scmp.eq.s32.totalorder %s20, 2
      %p55 = por %p53, %p54
      %p57 = scmp.ne.s32.totalorder %s40, %s56
      %p58 = scmp.eq.s32.totalorder %s20, 0
      %p59 = por %p57, %p58
      %s60 = ssub.s32 %s21, %s33
      %p61 = scmp.eq.s32.totalorder %s60, 0
      %s63 = sadd.s32 %s62, 1
      %s64 = scalar_select %p61, %s62, %s63
      %p67 = pneg %p61
      %p68 = scmp.eq.s32.totalorder %s14, 2
      %p69 = por %p67, %p68
      %p70 = scmp.ne.s32.totalorder %s62, %s65
      %p71 = scmp.eq.s32.totalorder %s14, 0
      %p72 = por %p70, %p71
      %p73 = scmp.ne.s32.totalorder %s62, %s65
      %p74 = scmp.eq.s32.totalorder %s19, 2
      %p75 = por %p73, %p74
      %p76 = scmp.ne.s32.totalorder %s65, %s66
      %p77 = scmp.eq.s32.totalorder %s19, 0
      %p78 = por %p76, %p77
      %p79 = scmp.ne.s32.totalorder %s65, %s66
      %p80 = scmp.eq.s32.totalorder %s20, 2
      %p81 = por %p79, %p80
      %p83 = scmp.ne.s32.totalorder %s66, %s82
      %p84 = scmp.eq.s32.totalorder %s20, 0
      %p85 = por %p83, %p84
      %s87 = sadd.s32 %s86, 1
      %p90 = scmp.eq.s32.totalorder %s14, 2
      %p91 = scmp.ne.s32.totalorder %s86, %s88
      %p92 = scmp.eq.s32.totalorder %s14, 0
      %p93 = por %p91, %p92
      %p94 = scmp.ne.s32.totalorder %s86, %s88
      %p95 = scmp.eq.s32.totalorder %s19, 2
      %p96 = por %p94, %p95
      %p97 = scmp.ne.s32.totalorder %s88, %s89
      %p98 = scmp.eq.s32.totalorder %s19, 0
      %p99 = por %p97, %p98
      %p100 = scmp.ne.s32.totalorder %s88, %s89
      %p101 = scmp.eq.s32.totalorder %s20, 2
      %p102 = por %p100, %p101
      %p104 = scmp.ne.s32.totalorder %s89, %s103
      %p105 = scmp.eq.s32.totalorder %s20, 0
      %p106 = por %p104, %p105
      %p107 = scmp.le.s32.totalorder 1, %s14
      %p108 = scmp.lt.s32.totalorder %s14, 4
      %p109 = pnand %p107, %p108
      %p110 = pneg %p109
      // Predicated region
      $region9: #{tpu_custom_call.1} parent=5 // pred_check
        _
      $region10: #{tpu_custom_call.1} parent=5 // pred_check_branch
        %112 = sbr.rel (%p109) target = $region12
      $region11: #{tpu_custom_call.1} parent=5 // pred_region
        %s113 = ssub.s32 %s14, 1
      $region12: #{tpu_custom_call.1} parent=5 // pred_fallthru
        _
      %p114 = scmp.lt.s32.totalorder %s14, 3
      // Predicated region
      $region13: #{tpu_custom_call.1} parent=5 // pred_check
        %p115 = pneg %p114
      $region14: #{tpu_custom_call.1} parent=5 // pred_check_branch
        %117 = sbr.rel (%p115) target = $region16
      $region15: #{tpu_custom_call.1} parent=5 // pred_region
        // Predicated region
        $region17: #{tpu_custom_call.1} parent=15 // pred_check
          %p118 = pneg %p46
        $region18: #{tpu_custom_call.1} parent=15 // pred_check_branch
          %120 = sbr.rel (%p118) target = $region20
        $region19: #{tpu_custom_call.1} parent=15 // pred_region
          %s121 = sand.u32 %s36, 1
          %s122 = scalar_lea.sflag [#allocation7], %s121
          %s123 = sand.u32 %s36, 1
          %s124 = smul.addr %s123, 64
          %s125 = scalar_lea.vmem [#allocation6], %s124
          %s127 = ssub.s32 1024, 1024
          %128 = vsyncadd %s122, %s127
          %s129 = smul.addr %s21, 16
          %s130 = smul.addr %s129, 64
          %s131 = scalar_lea.hbm %s2, %s130
          %s132 = sshll.u32 %s125, 4
          %s133 = int_to_ptr.vmem [resolvable:$true] %s132
          %138 = dma.hbm_to_vmem [thread:$0]  %s131, 1024, %s133, %s122, 64, 64, 4
        $region20: #{tpu_custom_call.1} parent=15 // pred_fallthru
          _
        // Predicated region
        $region21: #{tpu_custom_call.1} parent=15 // pred_check
          %p139 = pneg %p72
        $region22: #{tpu_custom_call.1} parent=15 // pred_check_branch
          %141 = sbr.rel (%p139) target = $region24
        $region23: #{tpu_custom_call.1} parent=15 // pred_region
          %p142 = scmp.lt.s32.totalorder %s21, 2
          %s143 = scalar_select %p142, %s21, 2
          %s144 = scalar_lea.vmem %s3, %s143
        $region24: #{tpu_custom_call.1} parent=15 // pred_fallthru
          _
      $region16: #{tpu_custom_call.1} parent=5 // pred_fallthru
        _
      %p145 = scmp.le.s32.totalorder 1, %s14
      %p146 = scmp.lt.s32.totalorder %s14, 4
      %p147 = pnand %p145, %p146
      %p148 = pneg %p147
      // Predicated region
      $region25: #{tpu_custom_call.1} parent=5 // pred_check
        _
      $region26: #{tpu_custom_call.1} parent=5 // pred_check_branch
        %150 = sbr.rel (%p147) target = $region28
      $region27: #{tpu_custom_call.1} parent=5 // pred_region
        %s151 = ssub.s32 %s14, 1
        %s152 = sand.u32 %s39, 1
        %s153 = scalar_lea.sflag [#allocation7], %s152
        %s154 = sand.u32 %s39, 1
        %s155 = smul.addr %s154, 64
        %s156 = scalar_lea.vmem [#allocation6], %s155
        // Predicated region
        $region29: #{tpu_custom_call.1} parent=27 // pred_check
          %p157 = pneg %p52
        $region30: #{tpu_custom_call.1} parent=27 // pred_check_branch
          %159 = sbr.rel (%p157) target = $region32
        $region31: #{tpu_custom_call.1} parent=27 // pred_region
          %160 = dma.done %s153, 1024
        $region32: #{tpu_custom_call.1} parent=27 // pred_fallthru
          _
        %s161 = sand.u32 %s39, 1
        %s162 = scalar_lea.sflag [#allocation7], %s161
        %s163 = sand.u32 %s39, 1
        %s164 = smul.addr %s163, 64
        %s165 = scalar_lea.vmem [#allocation6], %s164
        %p166 = pneg %p52
        %p167 = pneg %p49
        %p168 = scmp.lt.s32.totalorder %s23, 2
        %s169 = scalar_select %p168, %s23, 2
        %s170 = scalar_lea.vmem %s3, %s169
        %p171 = pneg %p78
        %p172 = pneg %p75
        %p173 = pneg %p99
        %p174 = pneg %p96
        %p175 = scmp.lt.s32.totalorder %s23, 2
        %s176 = scalar_select %p175, %s23, 2
        %s177 = scalar_lea.vmem %s3, %s176
        %p179 = scmp.eq.s32.totalorder %s23, 0
        %p180 = scmp.eq.s32.totalorder %s24, 0
        %p181 = pnand %p179, %p180
        %p182 = pneg %p181
        // Predicated region
        $region33: #{tpu_custom_call.1} parent=27 // pred_check
          _
        $region34: #{tpu_custom_call.1} parent=27 // pred_check_branch
          %184 = sbr.rel (%p181) target = $region36
        $region35: #{tpu_custom_call.1} parent=27 // pred_region
          // Predicated region
          $region37: #{tpu_custom_call.1} parent=35 // pred_check
            _
          $region38: #{tpu_custom_call.1} parent=35 // pred_check_branch
            %186 = sbr.rel target = $region40
          $region39: #{tpu_custom_call.1} parent=35 // pred_region
            %187 = sst [smem:[#allocation12]] [#allocation11]
            %188 = sst [smem:[#allocation13]] [#allocation10]
          $region40: #{tpu_custom_call.1} parent=35 // pred_fallthru
            _
          %190 = shalt.err (0)
          %s192 = sshll.u32 [#allocation2], 4
          %s193 = int_to_ptr.vmem [resolvable:$true] %s192
          %195 = dma.hbm_to_vmem [thread:$0]  %s0, 64, %s193, [#allocation5]
          %s196 = scalar_lea.sflag [#allocation5], 1
          // Predicated region
          $region41: #{tpu_custom_call.1} parent=35 // pred_check
            _
          $region42: #{tpu_custom_call.1} parent=35 // pred_check_branch
            %198 = sbr.rel target = $region44
          $region43: #{tpu_custom_call.1} parent=35 // pred_region
            %199 = sst [smem:[#allocation12]] [#allocation15]
            %200 = sst [smem:[#allocation13]] [#allocation14]
          $region44: #{tpu_custom_call.1} parent=35 // pred_fallthru
            _
          %202 = shalt.err (0)
          %s204 = sshll.u32 [#allocation4], 4
          %s205 = int_to_ptr.vmem [resolvable:$true] %s204
          %207 = dma.hbm_to_vmem [thread:$0]  %s1, 64, %s205, %s196
          %s208 = smul.u32 4, 1
          %s209 = smul.u32 %s208, 1
          %s210 = sshll.u32 %s209, 4
          %211 = dma.done %s196, %s210
          %s212 = sshll.u32 %s209, 4
          %213 = dma.done [#allocation5], %s212
        $region36: #{tpu_custom_call.1} parent=27 // pred_fallthru
          _
        // Predicated region
        $region45: #{tpu_custom_call.1} parent=27 // pred_check
          %p214 = pneg %p180
        $region46: #{tpu_custom_call.1} parent=27 // pred_check_branch
          %216 = sbr.rel (%p214) target = $region48
        $region47: #{tpu_custom_call.1} parent=27 // pred_region
          %v217 = vld [vmem:[#allocation2] sm:$0xf]
          %v218 = vld [vmem:[%s156] sm:$0xf]
          %v219 = vld [vmem:[%s156 + $0x4] sm:$0xf]
          %v220 = vld [vmem:[%s156 + $0x8] sm:$0xf]
          %v221 = vld [vmem:[%s156 + $0xc] sm:$0xf]
          %v222 = vld [vmem:[%s156 + $0x10] sm:$0xf]
          %v223 = vld [vmem:[%s156 + $0x14] sm:$0xf]
          %v224 = vld [vmem:[%s156 + $0x18] sm:$0xf]
          %v225 = vld [vmem:[%s156 + $0x1c] sm:$0xf]
          %v226 = vld [vmem:[%s156 + $0x20] sm:$0xf]
          %v227 = vld [vmem:[%s156 + $0x24] sm:$0xf]
          %v228 = vld [vmem:[%s156 + $0x28] sm:$0xf]
          %v229 = vld [vmem:[%s156 + $0x2c] sm:$0xf]
          %v230 = vld [vmem:[%s156 + $0x30] sm:$0xf]
          %v231 = vld [vmem:[%s156 + $0x34] sm:$0xf]
          %v232 = vld [vmem:[%s156 + $0x38] sm:$0xf]
          %v233 = vld [vmem:[%s156 + $0x3c] sm:$0xf]
          %v250 = vunpack.c.l.b16 %v218
          %v251 = vunpack.c.l.b16 %v219
          %v252 = vunpack.c.l.b16 %v220
          %v253 = vunpack.c.l.b16 %v221
          %v254 = vunpack.c.l.b16 %v222
          %v255 = vunpack.c.l.b16 %v223
          %v256 = vunpack.c.l.b16 %v224
          %v257 = vunpack.c.l.b16 %v225
          %v258 = vunpack.c.l.b16 %v226
          %v259 = vunpack.c.l.b16 %v227
          %v260 = vunpack.c.l.b16 %v228
          %v261 = vunpack.c.l.b16 %v229
          %v262 = vunpack.c.l.b16 %v230
          %v263 = vunpack.c.l.b16 %v231
          %v264 = vunpack.c.l.b16 %v232
          %v265 = vunpack.c.l.b16 %v233
          %v266 = vpack.c.b16 %v251, %v250
          %v267 = vpack.c.b16 %v253, %v252
          %v268 = vpack.c.b16 %v255, %v254
          %v269 = vpack.c.b16 %v257, %v256
          %v270 = vpack.c.b16 %v259, %v258
          %v271 = vpack.c.b16 %v261, %v260
          %v272 = vpack.c.b16 %v263, %v262
          %v273 = vpack.c.b16 %v265, %v264
          %282 = vmatprep.subr.bf16.mxu0 0
          %283 = vmatpush1.bf16.msra.mxu0 %v266
          %284 = vmatprep.subr.bf16.mxu0 0
          %285 = vmatpush1.bf16.msra.mxu0 %v267
          %286 = vmatprep.subr.bf16.mxu0 0
          %287 = vmatpush1.bf16.msra.mxu0 %v268
          %288 = vmatprep.subr.bf16.mxu0 0
          %289 = vmatpush1.bf16.msra.mxu0 %v269
          %290 = vmatprep.subr.bf16.mxu0 0
          %291 = vmatpush1.bf16.msra.mxu0 %v270
          %292 = vmatprep.subr.bf16.mxu0 0
          %293 = vmatpush1.bf16.msra.mxu0 %v271
          %294 = vmatprep.subr.bf16.mxu0 0
          %295 = vmatpush1.bf16.msra.mxu0 %v272
          %296 = vmatprep.subr.bf16.mxu0 0
          %297 = vmatpush1.bf16.msra.mxu0 %v273
          %298 = vmatprep.subr.bf16.mxu0 0
          %299 = vmatpush1.bf16.msra.mxu0 0
          %300 = vmatprep.subr.bf16.mxu0 0
          %301 = vmatpush1.bf16.msra.mxu0 0
          %302 = vmatprep.subr.bf16.mxu0 0
          %303 = vmatpush1.bf16.msra.mxu0 0
          %304 = vmatprep.subr.bf16.mxu0 0
          %305 = vmatpush1.bf16.msra.mxu0 0
          %306 = vmatprep.subr.bf16.mxu0 0
          %307 = vmatpush1.bf16.msra.mxu0 0
          %308 = vmatprep.subr.bf16.mxu0 0
          %309 = vmatpush1.bf16.msra.mxu0 0
          %310 = vmatprep.subr.bf16.mxu0 0
          %311 = vmatpush1.bf16.msra.mxu0 0
          %312 = vmatprep.subr.bf16.mxu0 0
          %313 = vmatpush1.bf16.msra.mxu0 0
          %314 = vmatprep.mubr.bf16.mxu0 0
          %315 = vmatmul.mubr.bf16.gmra.mrb[0].mxu0 %v217
          %v316 = vpop.f32.mrb[0].mxu0
          %v317 = vadd.f32 0.0, %v316
          %v318 = vpop.f32.mrb[0].mxu0
          %v319 = vpop.f32.mrb[0].mxu0
          %v320 = vpop.f32.mrb[0].mxu0
          %321 = vdwg.mxu0
          %v322 = vpack.c.bf16 %v317, %v317
          %323 = vst [vmem:[#allocation3] sm:$0xf] %v322
        $region48: #{tpu_custom_call.1} parent=27 // pred_fallthru
          _
        %s324 = smul.u32 %s24, 8
        %s325 = sshra.s32 %s324, 3
        %s326 = sand.u32 %s324, 7
        %s327 = smul.addr %s325, 4
        %s328 = scalar_lea.vmem [#allocation4], %s327
        %v329 = vld [vmem:[%s328] sm:$0xf]
        %v330 = vld [vmem:[#allocation3] sm:$0xf]
        %v331 = vld [vmem:[%s177] sm:$0x1]
        %v333 = vlaneseq
        %v334 = vshrl.u32 %v333, 7
        %v335 = vsub.s32 0, %v334
        %v336 = vrot.slane %v331, %v335
        %vm338 = vcmask 64512
        %v340 = vsel %vm338, %v329, 0
        %vm342 = vcmask 1043456
        %v344 = vsel %vm342, %v330, 0
        %346 = vmatprep.subr.bf16.mxu0 0
        %347 = vmatpush1.bf16.msra.mxu0 %v344
        %348 = vmatprep.subr.bf16.mxu0 0
        %349 = vmatpush1.bf16.msra.mxu0 0
        %350 = vmatprep.subr.bf16.mxu0 0
        %351 = vmatpush1.bf16.msra.mxu0 0
        %352 = vmatprep.subr.bf16.mxu0 0
        %353 = vmatpush1.bf16.msra.mxu0 0
        %354 = vmatprep.subr.bf16.mxu0 0
        %355 = vmatpush1.bf16.msra.mxu0 0
        %356 = vmatprep.subr.bf16.mxu0 0
        %357 = vmatpush1.bf16.msra.mxu0 0
        %358 = vmatprep.subr.bf16.mxu0 0
        %359 = vmatpush1.bf16.msra.mxu0 0
        %360 = vmatprep.subr.bf16.mxu0 0
        %361 = vmatpush1.bf16.msra.mxu0 0
        %362 = vmatprep.subr.bf16.mxu0 0
        %363 = vmatpush1.bf16.msra.mxu0 0
        %364 = vmatprep.subr.bf16.mxu0 0
        %365 = vmatpush1.bf16.msra.mxu0 0
        %366 = vmatprep.subr.bf16.mxu0 0
        %367 = vmatpush1.bf16.msra.mxu0 0
        %368 = vmatprep.subr.bf16.mxu0 0
        %369 = vmatpush1.bf16.msra.mxu0 0
        %370 = vmatprep.subr.bf16.mxu0 0
        %371 = vmatpush1.bf16.msra.mxu0 0
        %372 = vmatprep.subr.bf16.mxu0 0
        %373 = vmatpush1.bf16.msra.mxu0 0
        %374 = vmatprep.subr.bf16.mxu0 0
        %375 = vmatpush1.bf16.msra.mxu0 0
        %376 = vmatprep.subr.bf16.mxu0 0
        %377 = vmatpush1.bf16.msra.mxu0 0
        %378 = vmatprep.mubr.bf16.mxu0 0
        %379 = vmatmul.mubr.bf16.gmra.mrb[0].mxu0 %v340
        %v380 = vpop.f32.mrb[0].mxu0
        %v381 = vadd.f32 %v336, %v380
        %v382 = vpop.f32.mrb[0].mxu0
        %v383 = vpop.f32.mrb[0].mxu0
        %v384 = vpop.f32.mrb[0].mxu0
        %385 = vdwg.mxu0
        %p386 = scmp.lt.s32.totalorder %s23, 2
        %v387 = vmax.f32 %v381, 0.0
        %s388 = scalar_select %p386, 1, 0
        %v389 = vstv %s388
        %vm390 = vcmp.eq.s32.totalorder %v389, 1
        %v391 = vsel %vm390, %v387, %v381
        %v392 = vpack.c.bf16 %v391, %v391
        %s393 = smul.addr %s325, 4
        %s394 = scalar_lea.vmem [#allocation2], %s393
        %395 = vst [vmem:[%s394] sm:$0xf] %v392
        %p396 = scmp.eq.s32.totalorder %s23, 2
        // Predicated region
        $region49: #{tpu_custom_call.1} parent=27 // pred_check
          %p397 = pneg %p396
        $region50: #{tpu_custom_call.1} parent=27 // pred_check_branch
          %399 = sbr.rel (%p397) target = $region52
        $region51: #{tpu_custom_call.1} parent=27 // pred_region
          %400 = vst [vmem:[#allocation9] sm:$0xff] %v391
        $region52: #{tpu_custom_call.1} parent=27 // pred_fallthru
          _
        // Predicated region
        $region53: #{tpu_custom_call.1} parent=27 // pred_check
          %p401 = pneg %p96
        $region54: #{tpu_custom_call.1} parent=27 // pred_check_branch
          %403 = sbr.rel (%p401) target = $region56
        $region55: #{tpu_custom_call.1} parent=27 // pred_region
          %s405 = ssub.s32 128, 128
          %406 = vsyncadd [#allocation8], %s405
          %s408 = sshll.u32 [#allocation9], 4
          %s409 = int_to_ptr.vmem [resolvable:$true] %s408
          %411 = dma.vmem_to_hbm [thread:$0]  %s409, 128, %s4, [#allocation8]
        $region56: #{tpu_custom_call.1} parent=27 // pred_fallthru
          _
        // Predicated region
        $region57: #{tpu_custom_call.1} parent=27 // pred_check
          %p412 = pneg %p96
        $region58: #{tpu_custom_call.1} parent=27 // pred_check_branch
          %414 = sbr.rel (%p412) target = $region60
        $region59: #{tpu_custom_call.1} parent=27 // pred_region
          %415 = dma.done [#allocation8], 128
        $region60: #{tpu_custom_call.1} parent=27 // pred_fallthru
          _
      $region28: #{tpu_custom_call.1} parent=5 // pred_fallthru
        _
      %p416 = scmp.le.s32.totalorder 2, %s14
      // Predicated region
      $region61: #{tpu_custom_call.1} parent=5 // pred_check
        %p417 = pneg %p416
      $region62: #{tpu_custom_call.1} parent=5 // pred_check_branch
        %419 = sbr.rel (%p417) target = $region64
      $region63: #{tpu_custom_call.1} parent=5 // pred_region
        %s420 = ssub.s32 %s14, 2
      $region64: #{tpu_custom_call.1} parent=5 // pred_fallthru
        _
    $region6: #{tpu_custom_call.1} parent=1 // loop_footer
      %s18 = sadd.s32 1, %s14
    $region7: #{tpu_custom_call.1} parent=1 // loop_footer_branch
      %13 = sbr.rel target = $region3
    $region8: #{tpu_custom_call.1} parent=1 // loop_exit
      _
    %421 = vsyncpa [#allocation7], 1
    %s422 = scalar_lea.sflag [#allocation7], 1
    %423 = vsyncpa %s422, 1
    %424 = vsyncpa [#allocation8], 1
    %s425 = scalar_lea.sflag [#allocation8], 1
    %426 = vsyncpa %s425, 1
  %427 = vsyncmov [#allocation5]
  %s428 = vpop.sfrf %427
  %p429 = scmp.eq.s32.totalorder %s428, 0
  %p430 = pneg %p429
  %432 = shalt.err (%p430)
  %s433 = scalar_lea.sflag [#allocation5], 1
  %434 = vsyncmov %s433
  %s435 = vpop.sfrf %434
  %p436 = scmp.eq.s32.totalorder %s435, 0
  %p437 = pneg %p436
  %439 = shalt.err (%p437)

</llo_original>
